<compile_context>
chip_gen: v7x
topology: tpu7x:2x2x1
jax: 0.10.0
libtpu: 0.0.40
codegen_flags: <defaults>
</compile_context>

<pallas_src>
import functools

import jax
import jax.numpy as jnp
from jax.experimental import pallas as pl
from jax.experimental.pallas import tpu as pltpu

# ---------------- hyperparameters (small, consistent with the module) -------------
VOCAB = 100            # input_size
EMB = 32               # word_vec_size
N_CLASSES = 5
WINDOW_SIZES = (3, 4, 5)
N_FILTERS = (32, 32, 32)
BATCH = 2
SEQ = 8
DROPOUT_P = 0.5        # eval mode -> identity (no-op in forward here)


# ---------------------------------- kernel ----------------------------------------
def cnn_kernel(tok_ref, emb_ref, wconv_ref, wgen_ref, out_ref, *,
               window_sizes, n_filters, seq_len):
    """Whole forward (including embedding lookup) in one kernel invocation.

    tok_ref  : (B, L_ext, 1) int32 tokens; pad positions hold the sentinel id VOCAB
    emb_ref  : (VOCAB, E)    f32 embedding table
    wconv_ref: (wmax*E + 1, sumF) f32 — rows [0, wmax*E) = stacked/zero-padded conv
               weights (tap-major), row wmax*E = concatenated conv biases
    wgen_ref : (sumF + 1, C) f32 — rows [0, sumF) = generator weight^T, row sumF = bias
    out_ref  : (B, C) f32 log-softmax output
    """
    B, L_ext, _ = tok_ref.shape
    V, E = emb_ref.shape
    wmax = max(window_sizes)
    wmin = min(window_sizes)
    sumf = sum(n_filters)
    l_out_max = seq_len - wmin + 1
    assert L_ext == seq_len + (wmax - wmin)

    # --- fused embedding lookup: one-hot matmul on the MXU ------------------------
    tok = tok_ref[...]                                             # (B, L_ext, 1)
    iota_v = jax.lax.broadcasted_iota(jnp.int32, (B, L_ext, V), 2)
    onehot = (tok == iota_v).astype(jnp.float32)                   # sentinel -> all-zero row
    x = jnp.einsum('blv,ve->ble', onehot, emb_ref[...],
                   preferred_element_type=jnp.float32)             # (B, L_ext, E)

    # --- all windows fused into ONE im2col matmul ---------------------------------
    slab = jnp.concatenate([x[:, t:t + l_out_max, :] for t in range(wmax)],
                           axis=-1)                                # (B, l_out_max, wmax*E)
    w_big = wconv_ref[:wmax * E, :]                                # (wmax*E, sumF)
    b_all = wconv_ref[wmax * E:wmax * E + 1, :]                    # (1, sumF)
    s = jnp.einsum('blk,kf->blf', slab, w_big,
                   preferred_element_type=jnp.float32) + b_all     # (B, l_out_max, sumF)
    s = jnp.maximum(s, 0.0)                                        # ReLU
    # Dropout(p) is identity in eval mode.
    # TODO(synk): train-mode Dropout / BatchNorm2d branch not implemented (inference only).

    # --- mask out-of-range time positions, then max-pool over time ----------------
    # Window w is only valid for positions [0, seq_len - w]; extra im2col rows must
    # not win the max (they would contribute relu(bias)).  ReLU output >= 0, so -1
    # can never win for masked positions.
    pos = jax.lax.broadcasted_iota(jnp.int32, (B, l_out_max, sumf), 1)
    lane = jax.lax.broadcasted_iota(jnp.int32, (B, l_out_max, sumf), 2)
    valid_len = jnp.zeros((B, l_out_max, sumf), jnp.int32)
    off = 0
    for w, f in zip(window_sizes, n_filters):                      # static unroll (3)
        in_grp = (lane >= off) & (lane < off + f)
        valid_len = jnp.where(in_grp, seq_len - w + 1, valid_len)
        off += f
    s = jnp.where(pos < valid_len, s, -1.0)
    feat = jnp.max(s, axis=1)                                      # (B, sumF) — already concat'd

    # --- generator + log-softmax ---------------------------------------------------
    wg_t = wgen_ref[:sumf, :]                                      # (sumF, C)
    bg = wgen_ref[sumf:sumf + 1, :]                                # (1, C)
    logits = jnp.dot(feat, wg_t, preferred_element_type=jnp.float32) + bg
    m = jnp.max(logits, axis=-1, keepdims=True)
    lse = m + jnp.log(jnp.sum(jnp.exp(logits - m), axis=-1, keepdims=True))
    out_ref[...] = logits - lse


# --------------------------------- wrapper -----------------------------------------
def cnn_classifier_forward(tokens, params):
    B, S = tokens.shape
    wmax = max(WINDOW_SIZES)
    wmin = min(WINDOW_SIZES)
    L = max(S, wmax)                       # module pads to min_length = max(window_sizes)
    L_ext = L + (wmax - wmin)              # extra taps for the fused im2col (masked in-kernel)

    # Sentinel id VOCAB -> all-zero one-hot row -> zero embedding == module's zero pad.
    tok_ext = jnp.full((B, L_ext), VOCAB, dtype=jnp.int32)
    tok_ext = tok_ext.at[:, :S].set(tokens.astype(jnp.int32))
    tok_ext = tok_ext[..., None]           # (B, L_ext, 1); shaped host-side (no in-kernel reshape)

    kernel = functools.partial(cnn_kernel, window_sizes=WINDOW_SIZES,
                               n_filters=N_FILTERS, seq_len=L)
    vmem = pl.BlockSpec(memory_space=pltpu.MemorySpace.VMEM)

    args = (tok_ext, params['emb'], params['wconv'], params['wgen'])
    return pl.pallas_call(
        kernel,
        out_shape=jax.ShapeDtypeStruct((B, N_CLASSES), jnp.float32),
        in_specs=[vmem] * len(args),
        out_specs=vmem,
    )(*args)


# ------------------------------ deterministic params -------------------------------
def init_params(key):
    keys = jax.random.split(key, 9)
    wmax = max(WINDOW_SIZES)
    sumf = sum(N_FILTERS)

    params = {}
    params['emb'] = jax.random.normal(keys[0], (VOCAB, EMB), jnp.float32) * 0.1

    # Raw conv weights (F, w, E) (== Conv2d weight (F,1,w,E) squeezed) + biases (F,)
    w_big = jnp.zeros((wmax * EMB, sumf), jnp.float32)
    b_all = jnp.zeros((sumf,), jnp.float32)
    off = 0
    for i, (w, f) in enumerate(zip(WINDOW_SIZES, N_FILTERS)):
        Wk = jax.random.normal(keys[1 + 2 * i], (f, w, EMB), jnp.float32) * 0.1
        bk = jax.random.normal(keys[2 + 2 * i], (f,), jnp.float32) * 0.1
        params[f'w{w}'] = Wk
        params[f'b{w}'] = bk
        for t in range(w):                                   # zero-pad taps t >= w
            w_big = w_big.at[t * EMB:(t + 1) * EMB, off:off + f].set(Wk[:, t, :].T)
        b_all = b_all.at[off:off + f].set(bk)
        off += f

    # Linear(sum(n_filters), n_classes): weight (C, sumF), bias (C,)
    wg = jax.random.normal(keys[7], (N_CLASSES, sumf), jnp.float32) * 0.1
    bg = jax.random.normal(keys[8], (N_CLASSES,), jnp.float32) * 0.1
    params['wg'] = wg
    params['bg'] = bg

    # Packed kernel inputs (cuts DMA count): conv slab + bias row, generator^T + bias row.
    params['wconv'] = jnp.concatenate([w_big, b_all[None, :]], axis=0)   # (wmax*E+1, sumF)
    params['wgen'] = jnp.concatenate([wg.T, bg[None, :]], axis=0)        # (sumF+1, C)
    return params


# ------------------------------- pure-JAX reference ---------------------------------
def reference_forward(tokens, params):
    x = jnp.take(params['emb'], tokens, axis=0).astype(jnp.float32)
    min_length = max(WINDOW_SIZES)
    if x.shape[1] < min_length:
        pad = jnp.zeros((x.shape[0], min_length - x.shape[1], EMB), x.dtype)
        x = jnp.concatenate([x, pad], axis=1)
    L = x.shape[1]
    feats = []
    for w in WINDOW_SIZES:
        W = params[f'w{w}']                    # (F, w, E)
        b = params[f'b{w}']                    # (F,)
        l_out = L - w + 1
        windows = jnp.stack([x[:, i:i + l_out, :] for i in range(w)], axis=2)  # (B,l,w,E)
        s = jnp.einsum('blwe,fwe->blf', windows, W) + b[None, None, :]
        s = jnp.maximum(s, 0.0)
        feats.append(jnp.max(s, axis=1))
    feat = jnp.concatenate(feats, axis=-1)
    logits = feat @ params['wg'].T + params['bg'][None, :]
    return jax.nn.log_softmax(logits, axis=-1)


if __name__ == "__main__":
    key = jax.random.PRNGKey(0)
    k_tok, k_par = jax.random.split(key)
    tokens = jax.random.randint(k_tok, (BATCH, SEQ), 0, VOCAB, dtype=jnp.int32)
    params = init_params(k_par)

    out = cnn_classifier_forward(tokens, params)
    out = jax.block_until_ready(out)

    ref = reference_forward(tokens, params)
    assert out.shape == (BATCH, N_CLASSES)
    assert jnp.allclose(out, ref, rtol=1e-3, atol=1e-3), "mismatch vs reference"

    print("KERNEL_OK")
</pallas_src>

<mosaic_0001>
module attributes {stable_mosaic.version = 11 : i64} {
  func.func @cnn_kernel(%arg0: memref<2x10x1xi32, #tpu.memory_space<vmem>>, %arg1: memref<100x32xf32, #tpu.memory_space<vmem>>, %arg2: memref<161x96xf32, #tpu.memory_space<vmem>>, %arg3: memref<97x5xf32, #tpu.memory_space<vmem>>, %arg4: memref<2x5xf32, #tpu.memory_space<vmem>>) attributes {dimension_semantics = [], scalar_prefetch = 0 : i64, scratch_operands = 0 : i64, tpu.core_type = #tpu.core_type<tc>} {
    %c0 = arith.constant 0 : index
    %c0_0 = arith.constant 0 : index
    %c0_1 = arith.constant 0 : index
    %0 = vector.load %arg0[%c0, %c0_0, %c0_1] : memref<2x10x1xi32, #tpu.memory_space<vmem>>, vector<2x10x1xi32>
    %1 = tpu.iota {dimensions = array<i32: 2>} : vector<2x10x100xi32>
    %2 = vector.broadcast %0 : vector<2x10x1xi32> to vector<2x10x100xi32>
    %3 = arith.cmpi eq, %2, %1 : vector<2x10x100xi32>
    %4 = arith.extui %3 : vector<2x10x100xi1> to vector<2x10x100xi32>
    %5 = arith.sitofp %4 : vector<2x10x100xi32> to vector<2x10x100xf32>
    %c0_2 = arith.constant 0 : index
    %c0_3 = arith.constant 0 : index
    %6 = vector.load %arg1[%c0_2, %c0_3] : memref<100x32xf32, #tpu.memory_space<vmem>>, vector<100x32xf32>
    "tpu.trace_start"() <{level = 10 : i32, message = "blv,ve->ble"}> : () -> ()
    %cst = arith.constant dense<0.000000e+00> : vector<2x10x32xf32>
    %7 = tpu.matmul %5, %6, %cst {dimension_numbers = #tpu.dot_dimension_numbers<[2], [0], [0, 1], [1], [0, 0, 0, 1, 1, 1], [], []>} : vector<2x10x100xf32>, vector<100x32xf32>, vector<2x10x32xf32> -> vector<2x10x32xf32>
    "tpu.trace_stop"() : () -> ()
    %8 = vector.extract_strided_slice %7 {offsets = [0, 0, 0], sizes = [2, 6, 32], strides = [1, 1, 1]} : vector<2x10x32xf32> to vector<2x6x32xf32>
    %9 = vector.extract_strided_slice %7 {offsets = [0, 1, 0], sizes = [2, 6, 32], strides = [1, 1, 1]} : vector<2x10x32xf32> to vector<2x6x32xf32>
    %10 = vector.extract_strided_slice %7 {offsets = [0, 2, 0], sizes = [2, 6, 32], strides = [1, 1, 1]} : vector<2x10x32xf32> to vector<2x6x32xf32>
    %11 = vector.extract_strided_slice %7 {offsets = [0, 3, 0], sizes = [2, 6, 32], strides = [1, 1, 1]} : vector<2x10x32xf32> to vector<2x6x32xf32>
    %12 = vector.extract_strided_slice %7 {offsets = [0, 4, 0], sizes = [2, 6, 32], strides = [1, 1, 1]} : vector<2x10x32xf32> to vector<2x6x32xf32>
    %13 = tpu.concatenate %8, %9, %10, %11, %12 in 2 : vector<2x6x32xf32>, vector<2x6x32xf32>, vector<2x6x32xf32>, vector<2x6x32xf32>, vector<2x6x32xf32> -> vector<2x6x160xf32>
    %c0_4 = arith.constant 0 : index
    %c0_5 = arith.constant 0 : index
    %14 = vector.load %arg2[%c0_4, %c0_5] : memref<161x96xf32, #tpu.memory_space<vmem>>, vector<160x96xf32>
    %c160 = arith.constant 160 : index
    %c0_6 = arith.constant 0 : index
    %15 = vector.load %arg2[%c160, %c0_6] : memref<161x96xf32, #tpu.memory_space<vmem>>, vector<1x96xf32>
    "tpu.trace_start"() <{level = 10 : i32, message = "blk,kf->blf"}> : () -> ()
    %cst_7 = arith.constant dense<0.000000e+00> : vector<2x6x96xf32>
    %16 = tpu.matmul %13, %14, %cst_7 {dimension_numbers = #tpu.dot_dimension_numbers<[2], [0], [0, 1], [1], [0, 0, 0, 1, 1, 1], [], []>} : vector<2x6x160xf32>, vector<160x96xf32>, vector<2x6x96xf32> -> vector<2x6x96xf32>
    "tpu.trace_stop"() : () -> ()
    %17 = vector.shape_cast %15 : vector<1x96xf32> to vector<1x1x96xf32>
    %18 = vector.broadcast %17 : vector<1x1x96xf32> to vector<2x6x96xf32>
    %19 = arith.addf %16, %18 : vector<2x6x96xf32>
    %cst_8 = arith.constant 0.000000e+00 : f32
    %20 = vector.broadcast %cst_8 : f32 to vector<2x6x96xf32>
    %21 = arith.maximumf %19, %20 : vector<2x6x96xf32>
    %22 = tpu.iota {dimensions = array<i32: 1>} : vector<2x6x96xi32>
    %23 = tpu.iota {dimensions = array<i32: 2>} : vector<2x6x96xi32>
    %c0_i32 = arith.constant 0 : i32
    %24 = vector.broadcast %c0_i32 : i32 to vector<2x6x96xi32>
    %c0_i32_9 = arith.constant 0 : i32
    %25 = vector.broadcast %c0_i32_9 : i32 to vector<2x6x96xi32>
    %26 = arith.cmpi sge, %23, %25 : vector<2x6x96xi32>
    %c32_i32 = arith.constant 32 : i32
    %27 = vector.broadcast %c32_i32 : i32 to vector<2x6x96xi32>
    %28 = arith.cmpi slt, %23, %27 : vector<2x6x96xi32>
    %29 = arith.andi %26, %28 : vector<2x6x96xi1>
    %c6_i32 = arith.constant 6 : i32
    %30 = vector.broadcast %c6_i32 : i32 to vector<2x6x96xi32>
    %31 = arith.select %29, %30, %24 : vector<2x6x96xi1>, vector<2x6x96xi32>
    %c32_i32_10 = arith.constant 32 : i32
    %32 = vector.broadcast %c32_i32_10 : i32 to vector<2x6x96xi32>
    %33 = arith.cmpi sge, %23, %32 : vector<2x6x96xi32>
    %c64_i32 = arith.constant 64 : i32
    %34 = vector.broadcast %c64_i32 : i32 to vector<2x6x96xi32>
    %35 = arith.cmpi slt, %23, %34 : vector<2x6x96xi32>
    %36 = arith.andi %33, %35 : vector<2x6x96xi1>
    %c5_i32 = arith.constant 5 : i32
    %37 = vector.broadcast %c5_i32 : i32 to vector<2x6x96xi32>
    %38 = arith.select %36, %37, %31 : vector<2x6x96xi1>, vector<2x6x96xi32>
    %c64_i32_11 = arith.constant 64 : i32
    %39 = vector.broadcast %c64_i32_11 : i32 to vector<2x6x96xi32>
    %40 = arith.cmpi sge, %23, %39 : vector<2x6x96xi32>
    %c96_i32 = arith.constant 96 : i32
    %41 = vector.broadcast %c96_i32 : i32 to vector<2x6x96xi32>
    %42 = arith.cmpi slt, %23, %41 : vector<2x6x96xi32>
    %43 = arith.andi %40, %42 : vector<2x6x96xi1>
    %c4_i32 = arith.constant 4 : i32
    %44 = vector.broadcast %c4_i32 : i32 to vector<2x6x96xi32>
    %45 = arith.select %43, %44, %38 : vector<2x6x96xi1>, vector<2x6x96xi32>
    %46 = arith.cmpi slt, %22, %45 : vector<2x6x96xi32>
    %cst_12 = arith.constant -1.000000e+00 : f32
    %47 = vector.broadcast %cst_12 : f32 to vector<2x6x96xf32>
    %48 = arith.select %46, %21, %47 : vector<2x6x96xi1>, vector<2x6x96xf32>
    %cst_13 = arith.constant dense<0xFF800000> : vector<2x96xf32>
    %49 = vector.multi_reduction <maximumf>, %48, %cst_13 [1] : vector<2x6x96xf32> to vector<2x96xf32>
    %c0_14 = arith.constant 0 : index
    %c0_15 = arith.constant 0 : index
    %50 = vector.load %arg3[%c0_14, %c0_15] : memref<97x5xf32, #tpu.memory_space<vmem>>, vector<96x5xf32>
    %c96 = arith.constant 96 : index
    %c0_16 = arith.constant 0 : index
    %51 = vector.load %arg3[%c96, %c0_16] : memref<97x5xf32, #tpu.memory_space<vmem>>, vector<1x5xf32>
    %cst_17 = arith.constant dense<0.000000e+00> : vector<2x5xf32>
    %52 = tpu.matmul %49, %50, %cst_17 {dimension_numbers = #tpu.dot_dimension_numbers<[1], [0], [0], [1], [0, 0, 1, 1], [], []>} : vector<2x96xf32>, vector<96x5xf32>, vector<2x5xf32> -> vector<2x5xf32>
    %53 = vector.broadcast %51 : vector<1x5xf32> to vector<2x5xf32>
    %54 = arith.addf %52, %53 : vector<2x5xf32>
    %cst_18 = arith.constant dense<0xFF800000> : vector<2xf32>
    %55 = vector.multi_reduction <maximumf>, %54, %cst_18 [1] : vector<2x5xf32> to vector<2xf32>
    %56 = vector.shape_cast %55 : vector<2xf32> to vector<2x1xf32>
    %57 = vector.broadcast %56 : vector<2x1xf32> to vector<2x5xf32>
    %58 = arith.subf %54, %57 : vector<2x5xf32>
    %59 = math.exp %58 : vector<2x5xf32>
    %cst_19 = arith.constant dense<0.000000e+00> : vector<2xf32>
    %60 = vector.multi_reduction <add>, %59, %cst_19 [1] : vector<2x5xf32> to vector<2xf32>
    %61 = vector.shape_cast %60 : vector<2xf32> to vector<2x1xf32>
    %62 = math.log %61 : vector<2x1xf32>
    %63 = arith.addf %56, %62 : vector<2x1xf32>
    %64 = vector.broadcast %63 : vector<2x1xf32> to vector<2x5xf32>
    %65 = arith.subf %54, %64 : vector<2x5xf32>
    %c0_20 = arith.constant 0 : index
    %c0_21 = arith.constant 0 : index
    %66 = vector.load %arg4[%c0_20, %c0_21] : memref<2x5xf32, #tpu.memory_space<vmem>>, vector<2x5xf32>
    tpu.vector_store %arg4[%c0_20, %c0_21], %65 {strides = array<i32>} : memref<2x5xf32, #tpu.memory_space<vmem>>, vector<2x5xf32>,
    return
  }
}

</mosaic_0001>

<llo_original>
// kernel: tpu_custom_call.1
$region0: #{tpu_custom_call.1}
  #allocation0 [shape = 'u32[]', space=smem, size = 0x4, offset = 0x4, fixed_abs, tag = 'smem constant byte address 0x4 - core index']
  #allocation1 [shape = 'u32[144,128]{1,0:T(1,128)}', space=vmem, size = 0x12000, scoped, tag = 'internal scratch']
  %s0 = inlined_call_operand.vmem [shape: s32[2,10,1], index: 0, kind: input, shape index: {}]
  %s1 = inlined_call_operand.vmem [shape: f32[100,32], index: 1, kind: input, shape index: {}]
  %s2 = inlined_call_operand.vmem [shape: f32[161,96], index: 2, kind: input, shape index: {}]
  %s3 = inlined_call_operand.vmem [shape: f32[97,5], index: 3, kind: input, shape index: {}]
  %s4 = inlined_call_operand.hbm [shape: f32[2,5], index: 4, kind: output, shape index: {}]
  %s5 = sld [smem:[#allocation0]]
  $region26: #{tpu_custom_call.1} parent=0
    _
  %s7 = ssub.s32 1, %s5
  %s8 = scalar_select 0, %s7, %s5
  $region1: #{tpu_custom_call.1} parent=0
    #allocation2 [shape = 'u8[1024]{0}', space=vmem, size = 0x400, scoped, tag = 'output window, operand 0, single buffered']
    #allocation3 [shape = 's32[1]{0}', space=sflag, size = 0x4, scoped, tag = 'scoped memory for tpu_custom_call.1']
    %9 = vsyncpa [#allocation3], 0
    // Predicated region
    $region2: #{tpu_custom_call.1} parent=1 // pred_check
      _
    $region3: #{tpu_custom_call.1} parent=1 // pred_check_branch
      %11 = sbr.rel (0) target = $region5
    $region4: #{tpu_custom_call.1} parent=1 // pred_region
      _
    $region5: #{tpu_custom_call.1} parent=1 // pred_fallthru
      _
    // Predicated region
    $region6: #{tpu_custom_call.1} parent=1 // pred_check
      _
    $region7: #{tpu_custom_call.1} parent=1 // pred_check_branch
      %13 = sbr.rel (0) target = $region9
    $region8: #{tpu_custom_call.1} parent=1 // pred_region
      _
    $region9: #{tpu_custom_call.1} parent=1 // pred_fallthru
      _
    // Predicated region
    $region10: #{tpu_custom_call.1} parent=1 // pred_check
      _
    $region11: #{tpu_custom_call.1} parent=1 // pred_check_branch
      %15 = sbr.rel (0) target = $region13
    $region12: #{tpu_custom_call.1} parent=1 // pred_region
      _
    $region13: #{tpu_custom_call.1} parent=1 // pred_fallthru
      _
    // Predicated region
    $region14: #{tpu_custom_call.1} parent=1 // pred_check
      _
    $region15: #{tpu_custom_call.1} parent=1 // pred_check_branch
      %17 = sbr.rel (0) target = $region17
    $region16: #{tpu_custom_call.1} parent=1 // pred_region
      _
    $region17: #{tpu_custom_call.1} parent=1 // pred_fallthru
      _
    %v18 = vld [vmem:[%s0] sm:$0xff]
    %v19 = vld [vmem:[%s0 + $0x8] sm:$0x3]
    %v20 = vld [vmem:[%s0 + $0x10] sm:$0xff]
    %v21 = vld [vmem:[%s0 + $0x18] sm:$0x3]
    %v22 = vlaneseq
    %v23 = vand.u32 %v22, 127
    %24 = vset.pattern.permute.xlu0 0
    %25 = vperm.xlu0 %24, %v18
    %v26 = vpop.permute.xlu0 %25
    %27 = vset.pattern.permute.xlu0 0
    %28 = vperm.xlu0 %27, %v19
    %v29 = vpop.permute.xlu0 %28
    %30 = vset.pattern.permute.xlu0 0
    %31 = vperm.xlu0 %30, %v20
    %v32 = vpop.permute.xlu0 %31
    %33 = vset.pattern.permute.xlu0 0
    %34 = vperm.xlu0 %33, %v21
    %v35 = vpop.permute.xlu0 %34
    %vm36 = vcmp.eq.s32.totalorder %v26, %v23
    %vm37 = vcmp.eq.s32.totalorder %v29, %v23
    %vm38 = vcmp.eq.s32.totalorder %v32, %v23
    %vm39 = vcmp.eq.s32.totalorder %v35, %v23
    %v40 = vsel %vm36, 1, 0
    %v41 = vsel %vm37, 1, 0
    %v42 = vsel %vm38, 1, 0
    %v43 = vsel %vm39, 1, 0
    %v44 = vcvt.s32.f32 %v40
    %v45 = vcvt.s32.f32 %v41
    %v46 = vcvt.s32.f32 %v42
    %v47 = vcvt.s32.f32 %v43
    %v48 = vld [vmem:[%s1] sm:$0xff]
    %v49 = vld [vmem:[%s1 + $0x8] sm:$0xff]
    %v50 = vld [vmem:[%s1 + $0x10] sm:$0xff]
    %v51 = vld [vmem:[%s1 + $0x18] sm:$0xff]
    %v52 = vld [vmem:[%s1 + $0x20] sm:$0xff]
    %v53 = vld [vmem:[%s1 + $0x28] sm:$0xff]
    %v54 = vld [vmem:[%s1 + $0x30] sm:$0xff]
    %v55 = vld [vmem:[%s1 + $0x38] sm:$0xff]
    %v56 = vld [vmem:[%s1 + $0x40] sm:$0xff]
    %v57 = vld [vmem:[%s1 + $0x48] sm:$0xff]
    %v58 = vld [vmem:[%s1 + $0x50] sm:$0xff]
    %v59 = vld [vmem:[%s1 + $0x58] sm:$0xff]
    %v60 = vld [vmem:[%s1 + $0x60] sm:$0xf]
    %v65 = vcombine.high %v44, %v44
    %v67 = vunpack.c.l.s4 1983009808
    %v68 = vunpack.c.0.s8 %v67
    %v69 = vlaneseq
    %v70 = vshrl.u32 %v69, 7
    %v71 = vsub.s32 %v68, %v70
    %v72 = vrot.slane %v44, %v71
    %v74 = vunpack.c.l.s4 1983009808
    %v75 = vunpack.c.0.s8 %v74
    %v76 = vlaneseq
    %v77 = vshrl.u32 %v76, 7
    %v78 = vsub.s32 %v75, %v77
    %v79 = vrot.slane %v65, %v78
    %v80 = vcombine.high %v72, %v72
    %v81 = vcombine.high %v79, %v79
    %v83 = vunpack.c.l.s4 1983009808
    %v84 = vunpack.c.0.s8 %v83
    %v85 = vlaneseq
    %v86 = vshrl.u32 %v85, 7
    %v87 = vsub.s32 %v84, %v86
    %v88 = vrot.slane %v45, %v87
    %v89 = vcombine.high %v46, %v46
    %v91 = vunpack.c.l.s4 1983009808
    %v92 = vunpack.c.0.s8 %v91
    %v93 = vlaneseq
    %v94 = vshrl.u32 %v93, 7
    %v95 = vsub.s32 %v92, %v94
    %v96 = vrot.slane %v46, %v95
    %v98 = vunpack.c.l.s4 1983009808
    %v99 = vunpack.c.0.s8 %v98
    %v100 = vlaneseq
    %v101 = vshrl.u32 %v100, 7
    %v102 = vsub.s32 %v99, %v101
    %v103 = vrot.slane %v89, %v102
    %v104 = vcombine.high %v96, %v96
    %v105 = vcombine.high %v103, %v103
    %v107 = vunpack.c.l.s4 1983009808
    %v108 = vunpack.c.0.s8 %v107
    %v109 = vlaneseq
    %v110 = vshrl.u32 %v109, 7
    %v111 = vsub.s32 %v108, %v110
    %v112 = vrot.slane %v47, %v111
    %v113 = vcombine.low %v72, %v80
    %v114 = vcombine.low %v79, %v81
    %v116 = vunpack.c.l.s4 1983009808
    %v117 = vunpack.c.0.s8 %v116
    %v118 = vlaneseq
    %v119 = vshrl.u32 %v118, 7
    %v120 = vsub.s32 %v117, %v119
    %v121 = vrot.slane %v113, %v120
    %v123 = vunpack.c.l.s4 1983009808
    %v124 = vunpack.c.0.s8 %v123
    %v125 = vlaneseq
    %v126 = vshrl.u32 %v125, 7
    %v127 = vsub.s32 %v124, %v126
    %v128 = vrot.slane %v114, %v127
    %v129 = vcombine.low %v121, %v128
    %v130 = vcombine.low %v88, %v96
    %v131 = vcombine.low %v104, %v103
    %v133 = vunpack.c.l.s4 1983009808
    %v134 = vunpack.c.0.s8 %v133
    %v135 = vlaneseq
    %v136 = vshrl.u32 %v135, 7
    %v137 = vsub.s32 %v134, %v136
    %v138 = vrot.slane %v130, %v137
    %v140 = vunpack.c.l.s4 1983009808
    %v141 = vunpack.c.0.s8 %v140
    %v142 = vlaneseq
    %v143 = vshrl.u32 %v142, 7
    %v144 = vsub.s32 %v141, %v143
    %v145 = vrot.slane %v131, %v144
    %v146 = vcombine.low %v138, %v145
    %v147 = vcombine.low %v105, %v112
    %v149 = vunpack.c.l.s4 1983009808
    %v150 = vunpack.c.0.s8 %v149
    %v151 = vlaneseq
    %v152 = vshrl.u32 %v151, 7
    %v153 = vsub.s32 %v150, %v152
    %v154 = vrot.slane %v147, %v153
    %vm155 = vcmask 818176
    %v156 = vsel %vm155, %v129, 0
    %v158 = vsel %vm155, %v146, 0
    %v160 = vsel %vm155, %v154, 0
    %vm162 = vcmask 1043456
    %v164 = vsel %vm162, %v60, 0
    %166 = vmatprep.subr.mxu0 0.0
    %167 = vmatpush1.msra.mxu0 %v48
    %168 = vmatprep.subr.mxu0 0.0
    %169 = vmatpush1.msra.mxu0 %v49
    %170 = vmatprep.subr.mxu0 0.0
    %171 = vmatpush1.msra.mxu0 %v50
    %172 = vmatprep.subr.mxu0 0.0
    %173 = vmatpush1.msra.mxu0 %v51
    %174 = vmatprep.subr.mxu0 0.0
    %175 = vmatpush1.msra.mxu0 %v52
    %176 = vmatprep.subr.mxu0 0.0
    %177 = vmatpush1.msra.mxu0 %v53
    %178 = vmatprep.subr.mxu0 0.0
    %179 = vmatpush1.msra.mxu0 %v54
    %180 = vmatprep.subr.mxu0 0.0
    %181 = vmatpush1.msra.mxu0 %v55
    %182 = vmatprep.subr.mxu0 0.0
    %183 = vmatpush1.msra.mxu0 %v56
    %184 = vmatprep.subr.mxu0 0.0
    %185 = vmatpush1.msra.mxu0 %v57
    %186 = vmatprep.subr.mxu0 0.0
    %187 = vmatpush1.msra.mxu0 %v58
    %188 = vmatprep.subr.mxu0 0.0
    %189 = vmatpush1.msra.mxu0 %v59
    %190 = vmatprep.subr.mxu0 0.0
    %191 = vmatpush1.msra.mxu0 %v164
    %192 = vmatprep.subr.mxu0 0.0
    %193 = vmatpush1.msra.mxu0 0.0
    %194 = vmatprep.subr.mxu0 0.0
    %195 = vmatpush1.msra.mxu0 0.0
    %196 = vmatprep.subr.mxu0 0.0
    %197 = vmatpush1.msra.mxu0 0.0
    %198 = vmatprep.subr.mxu0 0.0
    %199 = vmatpush1.msra.mxu0 0.0
    %200 = vmatprep.subr.mxu0 0.0
    %201 = vmatpush1.msra.mxu0 0.0
    %202 = vmatprep.subr.mxu0 0.0
    %203 = vmatpush1.msra.mxu0 0.0
    %204 = vmatprep.subr.mxu0 0.0
    %205 = vmatpush1.msra.mxu0 0.0
    %206 = vmatprep.subr.mxu0 0.0
    %207 = vmatpush1.msra.mxu0 0.0
    %208 = vmatprep.subr.mxu0 0.0
    %209 = vmatpush1.msra.mxu0 0.0
    %210 = vmatprep.subr.mxu0 0.0
    %211 = vmatpush1.msra.mxu0 0.0
    %212 = vmatprep.subr.mxu0 0.0
    %213 = vmatpush1.msra.mxu0 0.0
    %214 = vmatprep.subr.mxu0 0.0
    %215 = vmatpush1.msra.mxu0 0.0
    %216 = vmatprep.subr.mxu0 0.0
    %217 = vmatpush1.msra.mxu0 0.0
    %218 = vmatprep.subr.mxu0 0.0
    %219 = vmatpush1.msra.mxu0 0.0
    %220 = vmatprep.subr.mxu0 0.0
    %221 = vmatpush1.msra.mxu0 0.0
    %222 = vmatprep.subr.mxu0 0.0
    %223 = vmatpush1.msra.mxu0 0.0
    %224 = vmatprep.subr.mxu0 0.0
    %225 = vmatpush1.msra.mxu0 0.0
    %226 = vmatprep.subr.mxu0 0.0
    %227 = vmatpush1.msra.mxu0 0.0
    %228 = vmatprep.subr.mxu0 0.0
    %229 = vmatpush1.msra.mxu0 0.0
    %230 = vmatprep.mubr.f32.mxu0 0.0
    %231 = vmatmul.mubr.f32.gmra.mrb[0].mxu0 %v156
    %v232 = vpop.f32.mrb[0].mxu0
    %v233 = vadd.f32 0.0, %v232
    %v234 = vpop.f32.mrb[0].mxu0
    %235 = vmatprep.mubr.f32.mxu0 0.0
    %236 = vmatmul.mubr.f32.gmra.mrb[0].mxu0 %v158
    %v237 = vpop.f32.mrb[0].mxu0
    %v238 = vadd.f32 0.0, %v237
    %v239 = vpop.f32.mrb[0].mxu0
    %240 = vmatprep.mubr.f32.mxu0 0.0
    %241 = vmatmul.mubr.f32.gmra.mrb[0].mxu0 %v160
    %v242 = vpop.f32.mrb[0].mxu0
    %v243 = vadd.f32 0.0, %v242
    %v244 = vpop.f32.mrb[0].mxu0
    %245 = vdwg.mxu0
    %v249 = vcombine.high %v233, %v233
    %v251 = vunpack.c.l.s4 1983009808
    %v252 = vunpack.c.0.s8 %v251
    %v253 = vlaneseq
    %v254 = vshrl.u32 %v253, 7
    %v255 = vsub.s32 %v252, %v254
    %v256 = vrot.slane %v233, %v255
    %v258 = vunpack.c.l.s4 1983009808
    %v259 = vunpack.c.0.s8 %v258
    %v260 = vlaneseq
    %v261 = vshrl.u32 %v260, 7
    %v262 = vsub.s32 %v259, %v261
    %v263 = vrot.slane %v249, %v262
    %v264 = vcombine.high %v256, %v256
    %v265 = vcombine.high %v263, %v263
    %v266 = vcombine.high %v238, %v238
    %v268 = vunpack.c.l.s4 1983009808
    %v269 = vunpack.c.0.s8 %v268
    %v270 = vlaneseq
    %v271 = vshrl.u32 %v270, 7
    %v272 = vsub.s32 %v269, %v271
    %v273 = vrot.slane %v238, %v272
    %v275 = vunpack.c.l.s4 1983009808
    %v276 = vunpack.c.0.s8 %v275
    %v277 = vlaneseq
    %v278 = vshrl.u32 %v277, 7
    %v279 = vsub.s32 %v276, %v278
    %v280 = vrot.slane %v266, %v279
    %v281 = vcombine.high %v273, %v273
    %v282 = vcombine.high %v280, %v280
    %v284 = vunpack.c.l.s4 1983009808
    %v285 = vunpack.c.0.s8 %v284
    %v286 = vlaneseq
    %v287 = vshrl.u32 %v286, 7
    %v288 = vsub.s32 %v285, %v287
    %v289 = vrot.slane %v243, %v288
    %v290 = vcombine.high %v289, %v289
    %v291 = vcombine.low %v256, %v264
    %v293 = vunpack.c.l.s4 1983009808
    %v294 = vunpack.c.0.s8 %v293
    %v295 = vlaneseq
    %v296 = vshrl.u32 %v295, 7
    %v297 = vsub.s32 %v294, %v296
    %v298 = vrot.slane %v291, %v297
    %v300 = vunpack.c.l.s4 1983009808
    %v301 = vunpack.c.0.s8 %v300
    %v302 = vlaneseq
    %v303 = vshrl.u32 %v302, 7
    %v304 = vsub.s32 %v301, %v303
    %v305 = vrot.slane %v263, %v304
    %v306 = vcombine.low %v298, %v305
    %v307 = vcombine.low %v281, %v280
    %v309 = vunpack.c.l.s4 1983009808
    %v310 = vunpack.c.0.s8 %v309
    %v311 = vlaneseq
    %v312 = vshrl.u32 %v311, 7
    %v313 = vsub.s32 %v310, %v312
    %v314 = vrot.slane %v307, %v313
    %v316 = vunpack.c.l.s4 1983009808
    %v317 = vunpack.c.0.s8 %v316
    %v318 = vlaneseq
    %v319 = vshrl.u32 %v318, 7
    %v320 = vsub.s32 %v317, %v319
    %v321 = vrot.slane %v282, %v320
    %v322 = vcombine.low %v314, %v321
    %v325 = vcombine.low %v263, %v265
    %v327 = vunpack.c.l.s4 1983009808
    %v328 = vunpack.c.0.s8 %v327
    %v329 = vlaneseq
    %v330 = vshrl.u32 %v329, 7
    %v331 = vsub.s32 %v328, %v330
    %v332 = vrot.slane %v325, %v331
    %v333 = vcombine.low %v298, %v332
    %v334 = vcombine.low %v282, %v289
    %v336 = vunpack.c.l.s4 1983009808
    %v337 = vunpack.c.0.s8 %v336
    %v338 = vlaneseq
    %v339 = vshrl.u32 %v338, 7
    %v340 = vsub.s32 %v337, %v339
    %v341 = vrot.slane %v334, %v340
    %v342 = vcombine.low %v314, %v341
    %v343 = vrot.slane %v333, 1
    %v344 = vrot.slane %v342, 1
    %345 = vrot.lane.b32.xlu0 %v343, 32
    %v346 = vpop.permute.xlu0 %345
    %347 = vrot.lane.b32.xlu0 %v344, 32
    %v348 = vpop.permute.xlu0 %347
    %v351 = vcombine.low %v264, %v263
    %v353 = vunpack.c.l.s4 1983009808
    %v354 = vunpack.c.0.s8 %v353
    %v355 = vlaneseq
    %v356 = vshrl.u32 %v355, 7
    %v357 = vsub.s32 %v354, %v356
    %v358 = vrot.slane %v351, %v357
    %v360 = vunpack.c.l.s4 1983009808
    %v361 = vunpack.c.0.s8 %v360
    %v362 = vlaneseq
    %v363 = vshrl.u32 %v362, 7
    %v364 = vsub.s32 %v361, %v363
    %v365 = vrot.slane %v265, %v364
    %v366 = vcombine.low %v358, %v365
    %v367 = vcombine.low %v280, %v282
    %v369 = vunpack.c.l.s4 1983009808
    %v370 = vunpack.c.0.s8 %v369
    %v371 = vlaneseq
    %v372 = vshrl.u32 %v371, 7
    %v373 = vsub.s32 %v370, %v372
    %v374 = vrot.slane %v367, %v373
    %v376 = vunpack.c.l.s4 1983009808
    %v377 = vunpack.c.0.s8 %v376
    %v378 = vlaneseq
    %v379 = vshrl.u32 %v378, 7
    %v380 = vsub.s32 %v377, %v379
    %v381 = vrot.slane %v289, %v380
    %v382 = vcombine.low %v374, %v381
    %383 = vrot.lane.b32.xlu0 %v366, 64
    %v384 = vpop.permute.xlu0 %383
    %385 = vrot.lane.b32.xlu0 %v382, 64
    %v386 = vpop.permute.xlu0 %385
    %v389 = vcombine.low %v265, %v273
    %v391 = vunpack.c.l.s4 1983009808
    %v392 = vunpack.c.0.s8 %v391
    %v393 = vlaneseq
    %v394 = vshrl.u32 %v393, 7
    %v395 = vsub.s32 %v392, %v394
    %v396 = vrot.slane %v389, %v395
    %v397 = vcombine.low %v358, %v396
    %v398 = vcombine.low %v289, %v290
    %v400 = vunpack.c.l.s4 1983009808
    %v401 = vunpack.c.0.s8 %v400
    %v402 = vlaneseq
    %v403 = vshrl.u32 %v402, 7
    %v404 = vsub.s32 %v401, %v403
    %v405 = vrot.slane %v398, %v404
    %v406 = vcombine.low %v374, %v405
    %v407 = vrot.slane %v397, 1
    %v408 = vrot.slane %v406, 1
    %409 = vrot.lane.b32.xlu0 %v407, 96
    %v410 = vpop.permute.xlu0 %409
    %411 = vrot.lane.b32.xlu0 %v408, 96
    %v412 = vpop.permute.xlu0 %411
    %v416 = vunpack.c.l.s4 1983009808
    %v417 = vunpack.c.0.s8 %v416
    %v418 = vlaneseq
    %v419 = vshrl.u32 %v418, 7
    %v420 = vsub.s32 %v417, %v419
    %v421 = vrot.slane %v273, %v420
    %v422 = vcombine.low %v332, %v421
    %v424 = vunpack.c.l.s4 1983009808
    %v425 = vunpack.c.0.s8 %v424
    %v426 = vlaneseq
    %v427 = vshrl.u32 %v426, 7
    %v428 = vsub.s32 %v425, %v427
    %v429 = vrot.slane %v290, %v428
    %v430 = vcombine.low %v341, %v429
    %vm431 = vcmask 261120
    %v432 = vsel %vm431, %v306, %v346
    %v433 = vsel %vm431, %v322, %v348
    %vm434 = vcmask 523264
    %v435 = vsel %vm434, %v432, %v384
    %v436 = vsel %vm434, %v433, %v386
    %vm437 = vcmask 785408
    %v438 = vsel %vm437, %v435, %v410
    %v439 = vsel %vm437, %v436, %v412
    %v440 = vld [vmem:[%s2] sm:$0xff]
    %v441 = vld [vmem:[%s2 + $0x8] sm:$0xff]
    %v442 = vld [vmem:[%s2 + $0x10] sm:$0xff]
    %v443 = vld [vmem:[%s2 + $0x18] sm:$0xff]
    %v444 = vld [vmem:[%s2 + $0x20] sm:$0xff]
    %v445 = vld [vmem:[%s2 + $0x28] sm:$0xff]
    %v446 = vld [vmem:[%s2 + $0x30] sm:$0xff]
    %v447 = vld [vmem:[%s2 + $0x38] sm:$0xff]
    %v448 = vld [vmem:[%s2 + $0x40] sm:$0xff]
    %v449 = vld [vmem:[%s2 + $0x48] sm:$0xff]
    %v450 = vld [vmem:[%s2 + $0x50] sm:$0xff]
    %v451 = vld [vmem:[%s2 + $0x58] sm:$0xff]
    %v452 = vld [vmem:[%s2 + $0x60] sm:$0xff]
    %v453 = vld [vmem:[%s2 + $0x68] sm:$0xff]
    %v454 = vld [vmem:[%s2 + $0x70] sm:$0xff]
    %v455 = vld [vmem:[%s2 + $0x78] sm:$0xff]
    %v456 = vld [vmem:[%s2 + $0x80] sm:$0xff]
    %v457 = vld [vmem:[%s2 + $0x88] sm:$0xff]
    %v458 = vld [vmem:[%s2 + $0x90] sm:$0xff]
    %v459 = vld [vmem:[%s2 + $0x98] sm:$0xff]
    %v460 = vld [vmem:[%s2 + $0xa0] sm:$0x1]
    %v461 = vlaneseq
    %v462 = vshrl.u32 %v461, 7
    %v463 = vsub.s32 0, %v462
    %v464 = vrot.slane %v460, %v463
    %v467 = vcombine.low %v438, %v422
    %v468 = vcombine.high %v438, %v422
    %v470 = vunpack.c.l.s4 1983009808
    %v471 = vunpack.c.0.s8 %v470
    %v472 = vlaneseq
    %v473 = vshrl.u32 %v472, 7
    %v474 = vsub.s32 %v471, %v473
    %v475 = vrot.slane %v467, %v474
    %v477 = vunpack.c.l.s4 1983009808
    %v478 = vunpack.c.0.s8 %v477
    %v479 = vlaneseq
    %v480 = vshrl.u32 %v479, 7
    %v481 = vsub.s32 %v478, %v480
    %v482 = vrot.slane %v468, %v481
    %v483 = vcombine.high %v475, %v475
    %v484 = vcombine.low %v439, %v430
    %v485 = vcombine.high %v439, %v430
    %v487 = vunpack.c.l.s4 1983009808
    %v488 = vunpack.c.0.s8 %v487
    %v489 = vlaneseq
    %v490 = vshrl.u32 %v489, 7
    %v491 = vsub.s32 %v488, %v490
    %v492 = vrot.slane %v484, %v491
    %v494 = vunpack.c.l.s4 1983009808
    %v495 = vunpack.c.0.s8 %v494
    %v496 = vlaneseq
    %v497 = vshrl.u32 %v496, 7
    %v498 = vsub.s32 %v495, %v497
    %v499 = vrot.slane %v485, %v498
    %v500 = vcombine.high %v492, %v492
    %v502 = vcombine.high %v464, %v464
    %v504 = vunpack.c.l.s4 1983009808
    %v505 = vunpack.c.0.s8 %v504
    %v506 = vlaneseq
    %v507 = vshrl.u32 %v506, 7
    %v508 = vsub.s32 %v505, %v507
    %v509 = vrot.slane %v464, %v508
    %v511 = vunpack.c.l.s4 1983009808
    %v512 = vunpack.c.0.s8 %v511
    %v513 = vlaneseq
    %v514 = vshrl.u32 %v513, 7
    %v515 = vsub.s32 %v512, %v514
    %v516 = vrot.slane %v502, %v515
    %v517 = vcombine.high %v509, %v509
    %v518 = vcombine.low %v475, %v483
    %v519 = vcombine.low %v482, %v492
    %v521 = vunpack.c.l.s4 1983009808
    %v522 = vunpack.c.0.s8 %v521
    %v523 = vlaneseq
    %v524 = vshrl.u32 %v523, 7
    %v525 = vsub.s32 %v522, %v524
    %v526 = vrot.slane %v518, %v525
    %v528 = vunpack.c.l.s4 1983009808
    %v529 = vunpack.c.0.s8 %v528
    %v530 = vlaneseq
    %v531 = vshrl.u32 %v530, 7
    %v532 = vsub.s32 %v529, %v531
    %v533 = vrot.slane %v519, %v532
    %v534 = vcombine.low %v526, %v533
    %v535 = vcombine.high %v526, %v533
    %v536 = vcombine.low %v500, %v499
    %v538 = vunpack.c.l.s4 1983009808
    %v539 = vunpack.c.0.s8 %v538
    %v540 = vlaneseq
    %v541 = vshrl.u32 %v540, 7
    %v542 = vsub.s32 %v539, %v541
    %v543 = vrot.slane %v536, %v542
    %v544 = vcombine.high %v543, %v543
    %v547 = vcombine.low %v509, %v517
    %v548 = vcombine.low %v516, %v509
    %v550 = vunpack.c.l.s4 1983009808
    %v551 = vunpack.c.0.s8 %v550
    %v552 = vlaneseq
    %v553 = vshrl.u32 %v552, 7
    %v554 = vsub.s32 %v551, %v553
    %v555 = vrot.slane %v547, %v554
    %v557 = vunpack.c.l.s4 1983009808
    %v558 = vunpack.c.0.s8 %v557
    %v559 = vlaneseq
    %v560 = vshrl.u32 %v559, 7
    %v561 = vsub.s32 %v558, %v560
    %v562 = vrot.slane %v548, %v561
    %v563 = vcombine.low %v555, %v562
    %v564 = vcombine.low %v517, %v516
    %v566 = vunpack.c.l.s4 1983009808
    %v567 = vunpack.c.0.s8 %v566
    %v568 = vlaneseq
    %v569 = vshrl.u32 %v568, 7
    %v570 = vsub.s32 %v567, %v569
    %v571 = vrot.slane %v564, %v570
    %v574 = vsel %vm431, %v535, 0
    %v576 = vsel %vm431, %v544, 0
    %578 = vmatprep.subr.mxu0 0.0
    %579 = vmatpush1.msra.mxu0 %v440
    %580 = vmatprep.subr.mxu0 0.0
    %581 = vmatpush1.msra.mxu0 %v441
    %582 = vmatprep.subr.mxu0 0.0
    %583 = vmatpush1.msra.mxu0 %v442
    %584 = vmatprep.subr.mxu0 0.0
    %585 = vmatpush1.msra.mxu0 %v443
    %586 = vmatprep.subr.mxu0 0.0
    %587 = vmatpush1.msra.mxu0 %v444
    %588 = vmatprep.subr.mxu0 0.0
    %589 = vmatpush1.msra.mxu0 %v445
    %590 = vmatprep.subr.mxu0 0.0
    %591 = vmatpush1.msra.mxu0 %v446
    %592 = vmatprep.subr.mxu0 0.0
    %593 = vmatpush1.msra.mxu0 %v447
    %594 = vmatprep.subr.mxu0 0.0
    %595 = vmatpush1.msra.mxu0 %v448
    %596 = vmatprep.subr.mxu0 0.0
    %597 = vmatpush1.msra.mxu0 %v449
    %598 = vmatprep.subr.mxu0 0.0
    %599 = vmatpush1.msra.mxu0 %v450
    %600 = vmatprep.subr.mxu0 0.0
    %601 = vmatpush1.msra.mxu0 %v451
    %602 = vmatprep.subr.mxu0 0.0
    %603 = vmatpush1.msra.mxu0 %v452
    %604 = vmatprep.subr.mxu0 0.0
    %605 = vmatpush1.msra.mxu0 %v453
    %606 = vmatprep.subr.mxu0 0.0
    %607 = vmatpush1.msra.mxu0 %v454
    %608 = vmatprep.subr.mxu0 0.0
    %609 = vmatpush1.msra.mxu0 %v455
    %610 = vmatprep.subr.mxu0 0.0
    %611 = vmatpush1.msra.mxu0 %v456
    %612 = vmatprep.subr.mxu0 0.0
    %613 = vmatpush1.msra.mxu0 %v457
    %614 = vmatprep.subr.mxu0 0.0
    %615 = vmatpush1.msra.mxu0 %v458
    %616 = vmatprep.subr.mxu0 0.0
    %617 = vmatpush1.msra.mxu0 %v459
    %618 = vmatprep.subr.mxu0 0.0
    %619 = vmatpush1.msra.mxu0 0.0
    %620 = vmatprep.subr.mxu0 0.0
    %621 = vmatpush1.msra.mxu0 0.0
    %622 = vmatprep.subr.mxu0 0.0
    %623 = vmatpush1.msra.mxu0 0.0
    %624 = vmatprep.subr.mxu0 0.0
    %625 = vmatpush1.msra.mxu0 0.0
    %626 = vmatprep.subr.mxu0 0.0
    %627 = vmatpush1.msra.mxu0 0.0
    %628 = vmatprep.subr.mxu0 0.0
    %629 = vmatpush1.msra.mxu0 0.0
    %630 = vmatprep.subr.mxu0 0.0
    %631 = vmatpush1.msra.mxu0 0.0
    %632 = vmatprep.subr.mxu0 0.0
    %633 = vmatpush1.msra.mxu0 0.0
    %634 = vmatprep.subr.mxu0 0.0
    %635 = vmatpush1.msra.mxu0 0.0
    %636 = vmatprep.subr.mxu0 0.0
    %637 = vmatpush1.msra.mxu0 0.0
    %638 = vmatprep.subr.mxu0 0.0
    %639 = vmatpush1.msra.mxu0 0.0
    %640 = vmatprep.subr.mxu0 0.0
    %641 = vmatpush1.msra.mxu0 0.0
    %642 = vmatprep.mubr.f32.mxu0 %v574
    %643 = vmatmul.mubr.f32.gmra.mrb[0].mxu0 %v534
    %v644 = vpop.f32.mrb[0].mxu0
    %v645 = vadd.f32 %v563, %v644
    %v646 = vpop.f32.mrb[0].mxu0
    %647 = vmatprep.mubr.f32.mxu0 %v576
    %648 = vmatmul.mubr.f32.gmra.mrb[0].mxu0 %v543
    %v649 = vpop.f32.mrb[0].mxu0
    %v650 = vadd.f32 %v571, %v649
    %v651 = vpop.f32.mrb[0].mxu0
    %652 = vdwg.mxu0
    %v655 = vcombine.high %v645, %v645
    %v657 = vunpack.c.l.s4 1983009808
    %v658 = vunpack.c.0.s8 %v657
    %v659 = vlaneseq
    %v660 = vshrl.u32 %v659, 7
    %v661 = vsub.s32 %v658, %v660
    %v662 = vrot.slane %v645, %v661
    %v664 = vunpack.c.l.s4 1983009808
    %v665 = vunpack.c.0.s8 %v664
    %v666 = vlaneseq
    %v667 = vshrl.u32 %v666, 7
    %v668 = vsub.s32 %v665, %v667
    %v669 = vrot.slane %v655, %v668
    %v670 = vcombine.high %v662, %v662
    %v671 = vcombine.high %v669, %v669
    %v673 = vunpack.c.l.s4 1983009808
    %v674 = vunpack.c.0.s8 %v673
    %v675 = vlaneseq
    %v676 = vshrl.u32 %v675, 7
    %v677 = vsub.s32 %v674, %v676
    %v678 = vrot.slane %v650, %v677
    %v679 = vcombine.high %v678, %v678
    %v686 = vmax.f32 %v662, 0.0
    %v687 = vmax.f32 %v670, 0.0
    %v688 = vmax.f32 %v669, 0.0
    %v689 = vmax.f32 %v671, 0.0
    %v690 = vmax.f32 %v678, 0.0
    %v691 = vmax.f32 %v679, 0.0
    %v692 = vlaneseq
    %v693 = vshrl.u32 %v692, 7
    %vm694 = vcmp.ge.s32.totalorder %v23, 0
    %vm695 = vcmp.lt.s32.totalorder %v23, 32
    %vm696 = vmand %vm694, %vm695
    %v697 = vsel %vm696, 6, 0
    %vm698 = vcmp.ge.s32.totalorder %v23, 32
    %vm699 = vcmp.lt.s32.totalorder %v23, 64
    %vm700 = vmand %vm698, %vm699
    %v701 = vsel %vm700, 5, %v697
    %vm702 = vcmp.ge.s32.totalorder %v23, 64
    %vm703 = vcmp.lt.s32.totalorder %v23, 96
    %vm704 = vmand %vm702, %vm703
    %v705 = vsel %vm704, 4, %v701
    %vm706 = vcmp.lt.s32.totalorder %v693, %v705
    %v713 = vcombine.low %v686, %v687
    %v715 = vunpack.c.l.s4 1983009808
    %v716 = vunpack.c.0.s8 %v715
    %v717 = vlaneseq
    %v718 = vshrl.u32 %v717, 7
    %v719 = vsub.s32 %v716, %v718
    %v720 = vrot.slane %v713, %v719
    %v722 = vunpack.c.l.s4 1983009808
    %v723 = vunpack.c.0.s8 %v722
    %v724 = vlaneseq
    %v725 = vshrl.u32 %v724, 7
    %v726 = vsub.s32 %v723, %v725
    %v727 = vrot.slane %v688, %v726
    %v728 = vcombine.low %v720, %v727
    %v729 = vcombine.low %v689, %v690
    %v731 = vunpack.c.l.s4 1983009808
    %v732 = vunpack.c.0.s8 %v731
    %v733 = vlaneseq
    %v734 = vshrl.u32 %v733, 7
    %v735 = vsub.s32 %v732, %v734
    %v736 = vrot.slane %v729, %v735
    %v738 = vunpack.c.l.s4 1983009808
    %v739 = vunpack.c.0.s8 %v738
    %v740 = vlaneseq
    %v741 = vshrl.u32 %v740, 7
    %v742 = vsub.s32 %v739, %v741
    %v743 = vrot.slane %v691, %v742
    %v744 = vcombine.low %v736, %v743
    %v747 = vsel %vm706, %v728, -1.0
    %v748 = vsel %vm706, %v744, -1.0
    %vm749 = vcmask 783360
    %v750 = vsel %vm749, %v747, -inf
    %v751 = vrot.slane %v750, 4
    %v752 = vmax.f32 %v750, %v751
    %v753 = vrot.slane %v752, 2
    %v754 = vmax.f32 %v752, %v753
    %v755 = vrot.slane %v754, 1
    %v756 = vmax.f32 %v754, %v755
    %v757 = vsel %vm749, %v748, -inf
    %v758 = vrot.slane %v757, 4
    %v759 = vmax.f32 %v757, %v758
    %v760 = vrot.slane %v759, 2
    %v761 = vmax.f32 %v759, %v760
    %v762 = vrot.slane %v761, 1
    %v763 = vmax.f32 %v761, %v762
    %v764 = vld [vmem:[%s3] sm:$0xff]
    %v765 = vld [vmem:[%s3 + $0x8] sm:$0xff]
    %v766 = vld [vmem:[%s3 + $0x10] sm:$0xff]
    %v767 = vld [vmem:[%s3 + $0x18] sm:$0xff]
    %v768 = vld [vmem:[%s3 + $0x20] sm:$0xff]
    %v769 = vld [vmem:[%s3 + $0x28] sm:$0xff]
    %v770 = vld [vmem:[%s3 + $0x30] sm:$0xff]
    %v771 = vld [vmem:[%s3 + $0x38] sm:$0xff]
    %v772 = vld [vmem:[%s3 + $0x40] sm:$0xff]
    %v773 = vld [vmem:[%s3 + $0x48] sm:$0xff]
    %v774 = vld [vmem:[%s3 + $0x50] sm:$0xff]
    %v775 = vld [vmem:[%s3 + $0x58] sm:$0xff]
    %v776 = vld [vmem:[%s3 + $0x60] sm:$0x1]
    %v777 = vlaneseq
    %v778 = vshrl.u32 %v777, 7
    %v779 = vsub.s32 0, %v778
    %v780 = vrot.slane %v776, %v779
    %vm783 = vcmask 1041409
    %v784 = vsel %vm783, %v763, %v756
    %v785 = vsel %vm437, %v784, 0
    %787 = vmatprep.subr.mxu0 0.0
    %788 = vmatpush1.msra.mxu0 %v764
    %789 = vmatprep.subr.mxu0 0.0
    %790 = vmatpush1.msra.mxu0 %v765
    %791 = vmatprep.subr.mxu0 0.0
    %792 = vmatpush1.msra.mxu0 %v766
    %793 = vmatprep.subr.mxu0 0.0
    %794 = vmatpush1.msra.mxu0 %v767
    %795 = vmatprep.subr.mxu0 0.0
    %796 = vmatpush1.msra.mxu0 %v768
    %797 = vmatprep.subr.mxu0 0.0
    %798 = vmatpush1.msra.mxu0 %v769
    %799 = vmatprep.subr.mxu0 0.0
    %800 = vmatpush1.msra.mxu0 %v770
    %801 = vmatprep.subr.mxu0 0.0
    %802 = vmatpush1.msra.mxu0 %v771
    %803 = vmatprep.subr.mxu0 0.0
    %804 = vmatpush1.msra.mxu0 %v772
    %805 = vmatprep.subr.mxu0 0.0
    %806 = vmatpush1.msra.mxu0 %v773
    %807 = vmatprep.subr.mxu0 0.0
    %808 = vmatpush1.msra.mxu0 %v774
    %809 = vmatprep.subr.mxu0 0.0
    %810 = vmatpush1.msra.mxu0 %v775
    %811 = vmatprep.subr.mxu0 0.0
    %812 = vmatpush1.msra.mxu0 0.0
    %813 = vmatprep.subr.mxu0 0.0
    %814 = vmatpush1.msra.mxu0 0.0
    %815 = vmatprep.subr.mxu0 0.0
    %816 = vmatpush1.msra.mxu0 0.0
    %817 = vmatprep.subr.mxu0 0.0
    %818 = vmatpush1.msra.mxu0 0.0
    %819 = vmatprep.subr.mxu0 0.0
    %820 = vmatpush1.msra.mxu0 0.0
    %821 = vmatprep.subr.mxu0 0.0
    %822 = vmatpush1.msra.mxu0 0.0
    %823 = vmatprep.subr.mxu0 0.0
    %824 = vmatpush1.msra.mxu0 0.0
    %825 = vmatprep.subr.mxu0 0.0
    %826 = vmatpush1.msra.mxu0 0.0
    %827 = vmatprep.subr.mxu0 0.0
    %828 = vmatpush1.msra.mxu0 0.0
    %829 = vmatprep.subr.mxu0 0.0
    %830 = vmatpush1.msra.mxu0 0.0
    %831 = vmatprep.subr.mxu0 0.0
    %832 = vmatpush1.msra.mxu0 0.0
    %833 = vmatprep.subr.mxu0 0.0
    %834 = vmatpush1.msra.mxu0 0.0
    %835 = vmatprep.subr.mxu0 0.0
    %836 = vmatpush1.msra.mxu0 0.0
    %837 = vmatprep.subr.mxu0 0.0
    %838 = vmatpush1.msra.mxu0 0.0
    %839 = vmatprep.subr.mxu0 0.0
    %840 = vmatpush1.msra.mxu0 0.0
    %841 = vmatprep.subr.mxu0 0.0
    %842 = vmatpush1.msra.mxu0 0.0
    %843 = vmatprep.subr.mxu0 0.0
    %844 = vmatpush1.msra.mxu0 0.0
    %845 = vmatprep.subr.mxu0 0.0
    %846 = vmatpush1.msra.mxu0 0.0
    %847 = vmatprep.subr.mxu0 0.0
    %848 = vmatpush1.msra.mxu0 0.0
    %849 = vmatprep.subr.mxu0 0.0
    %850 = vmatpush1.msra.mxu0 0.0
    %851 = vmatprep.mubr.f32.mxu0 0.0
    %852 = vmatmul.mubr.f32.gmra.mrb[0].mxu0 %v785
    %v853 = vpop.f32.mrb[0].mxu0
    %v854 = vadd.f32 %v780, %v853
    %v855 = vpop.f32.mrb[0].mxu0
    %856 = vdwg.mxu0
    %vm857 = vcmask 33792
    %v858 = vsel %vm857, %v854, -inf
    %859 = vmax.xlane.f32.xlu0 %v858
    %v860 = vpop.xlane.xlu0 %859
    %v861 = vsub.f32 %v854, %v860
    %v862 = vmul.f32 %v861, 1.442695
    %v863 = vpow.pop %v862
    %v864 = vsel %vm857, %v863, 0.0
    %865 = vadd.xlane.f32.xlu0 %v864
    %v866 = vpop.xlane.xlu0 %865
    %v867 = vlog2.pop %v866
    %v868 = vmul.f32 %v867, 0.6931472
    %v869 = vadd.f32 %v860, %v868
    %v870 = vsub.f32 %v854, %v869
    %871 = vst.msk [vmem:[#allocation2] sm:$0x3] %vm857, %v870
    // Predicated region
    $region18: #{tpu_custom_call.1} parent=1 // pred_check
      _
    $region19: #{tpu_custom_call.1} parent=1 // pred_check_branch
      %873 = sbr.rel (0) target = $region21
    $region20: #{tpu_custom_call.1} parent=1 // pred_region
      %s875 = ssub.s32 32, 32
      %876 = vsyncadd [#allocation3], %s875
      %s878 = sshll.u32 [#allocation2], 4
      %s879 = int_to_ptr.vmem [resolvable:$true] %s878
      %881 = dma.vmem_to_hbm [thread:$0]  %s879, 32, %s4, [#allocation3]
    $region21: #{tpu_custom_call.1} parent=1 // pred_fallthru
      _
    // Predicated region
    $region22: #{tpu_custom_call.1} parent=1 // pred_check
      _
    $region23: #{tpu_custom_call.1} parent=1 // pred_check_branch
      %883 = sbr.rel (0) target = $region25
    $region24: #{tpu_custom_call.1} parent=1 // pred_region
      %884 = dma.done [#allocation3], 32
    $region25: #{tpu_custom_call.1} parent=1 // pred_fallthru
      _
    %885 = vsyncpa [#allocation3], 1

</llo_original>
